<compile_context>
chip_gen: v5e
topology: v5e:2x2
jax: 0.10.0
libtpu: 0.0.40
codegen_flags: <defaults>
</compile_context>

<pallas_src>
import functools

import jax
import jax.numpy as jnp
from jax.experimental import pallas as pl
from jax.experimental.pallas import tpu as pltpu


# ----------------------------------------------------------------------------- #
# Pallas kernel
# ----------------------------------------------------------------------------- #
def _layernorm2d_kernel(x_ref, g_ref, b_ref, o_ref, *, inv_c, eps):
    # x_ref: (1, C, TL) block of (B, C, H*W).  Channels on sublanes, spatial on lanes.
    x = x_ref[0].astype(jnp.float32)                           # (C, TL)
    # One-pass stats over the channel (sublane) axis.
    s1 = jnp.sum(x, axis=0, keepdims=True)                     # (1, TL)
    s2 = jnp.sum(x * x, axis=0, keepdims=True)                 # (1, TL)
    mu = s1 * inv_c
    var = jnp.maximum(s2 * inv_c - mu * mu, 0.0)               # biased var (matches nn.LayerNorm)
    r = jax.lax.rsqrt(var + eps)                               # (1, TL)
    # gamma/beta arrive as lane-dense (C, 128) tiles; take the per-channel column.
    g = g_ref[...].astype(jnp.float32)[:, :1]                  # (C, 1)
    b = b_ref[...].astype(jnp.float32)[:, :1]                  # (C, 1)
    # Fused normalize + affine, lane-dense store.
    o_ref[0] = ((x - mu) * r * g + b).astype(o_ref.dtype)


# ----------------------------------------------------------------------------- #
# Tiling / VMEM helpers
# ----------------------------------------------------------------------------- #
def _vmem_capacity_bytes():
    """Physical VMEM per core; conservative (v7x-sized) fallback if unqueryable."""
    try:
        info = pltpu.get_tpu_info()
        cap = getattr(info, "vmem_capacity_bytes", None)
        if cap:
            return int(cap)
    except Exception:
        pass
    return 64 * 1024 * 1024


def _vmem_limit_bytes(capacity):
    # 3/4 of physical, capped at 64 MiB: ~48 MiB on v7x, 64 MiB on v5e/v6e.
    return int(min(capacity * 3 // 4, 64 * 1024 * 1024))


def _spatial_tile(L, C, itemsize, vmem_limit, *, max_lanes=65536):
    """Lane-aligned spatial tile sized against the VMEM budget.

    Per lane we charge:
      * 2x double-buffered input block + 2x double-buffered output block
        at the HBM dtype width, plus
      * ~3 live full-tile f32 intermediates inside the kernel.
    ~60% of the vmem limit is spent on the tile working set (headroom for the
    compiler's own scratch, gamma/beta buffers, etc.).
    """
    per_lane = C * (4 * itemsize + 3 * 4)
    budget = (vmem_limit * 6) // 10
    tl = min(L, max_lanes, max(128, budget // per_lane))
    if tl >= L:
        return L                                   # full extent: always a legal block shape
    return max(128, (tl // 128) * 128)             # lane-aligned partial tile


# ----------------------------------------------------------------------------- #
# Wrapper
# ----------------------------------------------------------------------------- #
def layernorm2d(x_nchw, gamma, beta, *, eps=1e-5, max_lanes=65536):
    """LayerNorm over the channel dim of an NCHW tensor (PyTorch LayerNorm2D)."""
    B, C, H, W = x_nchw.shape
    L = H * W
    x3 = x_nchw.reshape(B, C, L)                   # contiguous reshape, no data movement

    vmem_cap = _vmem_capacity_bytes()
    vmem_limit = _vmem_limit_bytes(vmem_cap)
    TL = _spatial_tile(L, C, x_nchw.dtype.itemsize, vmem_limit, max_lanes=max_lanes)
    grid = (B, pl.cdiv(L, TL))

    # Lane-dense replicas of gamma/beta so their loads are unmasked.
    g2 = jnp.broadcast_to(gamma.reshape(C, 1).astype(x_nchw.dtype), (C, 128))
    b2 = jnp.broadcast_to(beta.reshape(C, 1).astype(x_nchw.dtype), (C, 128))

    out = pl.pallas_call(
        functools.partial(_layernorm2d_kernel, inv_c=1.0 / C, eps=eps),
        out_shape=jax.ShapeDtypeStruct((B, C, L), x_nchw.dtype),
        grid=grid,
        in_specs=[
            pl.BlockSpec((1, C, TL), lambda b, l: (b, 0, l)),
            pl.BlockSpec((C, 128), lambda b, l: (0, 0)),
            pl.BlockSpec((C, 128), lambda b, l: (0, 0)),
        ],
        out_specs=pl.BlockSpec((1, C, TL), lambda b, l: (b, 0, l)),
        compiler_params=pltpu.CompilerParams(
            dimension_semantics=("parallel", "parallel"),
            vmem_limit_bytes=vmem_limit,
        ),
    )(x3, g2, b2)
    return out.reshape(B, C, H, W)


# ----------------------------------------------------------------------------- #
# Pure-JAX reference (mirrors the PyTorch module exactly) for validation
# ----------------------------------------------------------------------------- #
def layernorm2d_ref(x, gamma, beta, eps=1e-5):
    xt = jnp.transpose(x, (0, 2, 3, 1)).astype(jnp.float32)     # b c h w -> b h w c
    mu = jnp.mean(xt, axis=-1, keepdims=True)
    var = jnp.mean((xt - mu) ** 2, axis=-1, keepdims=True)
    y = (xt - mu) * jax.lax.rsqrt(var + eps) * gamma.astype(jnp.float32) \
        + beta.astype(jnp.float32)
    return jnp.transpose(y, (0, 3, 1, 2)).astype(x.dtype)       # b h w c -> b c h w


# ----------------------------------------------------------------------------- #
if __name__ == "__main__":
    key = jax.random.PRNGKey(0)
    k1, k2, k3, k4, k5 = jax.random.split(key, 5)

    # Small case: full-extent spatial block (L <= TL).
    B, C, H, W = 2, 16, 16, 16
    x = jax.random.normal(k1, (B, C, H, W), jnp.float32)
    gamma = 1.0 + 0.1 * jax.random.normal(k2, (C,), jnp.float32)
    beta = 0.1 * jax.random.normal(k3, (C,), jnp.float32)

    y = layernorm2d(x, gamma, beta)
    jax.block_until_ready(y)
    assert y.shape == (B, C, H, W), y.shape
    assert bool(jnp.all(jnp.isfinite(y)))
    y_ref = layernorm2d_ref(x, gamma, beta)
    assert bool(jnp.allclose(y, y_ref, rtol=1e-5, atol=1e-5)), \
        float(jnp.max(jnp.abs(y - y_ref)))

    # Multi-block spatial path (force small tiles via max_lanes), even L/TL split.
    H2 = W2 = 64
    x2 = jax.random.normal(k4, (B, C, H2, W2), jnp.float32)
    y2 = layernorm2d(x2, gamma, beta, max_lanes=1024)
    jax.block_until_ready(y2)
    y2_ref = layernorm2d_ref(x2, gamma, beta)
    assert bool(jnp.allclose(y2, y2_ref, rtol=1e-5, atol=1e-5)), \
        float(jnp.max(jnp.abs(y2 - y2_ref)))

    # Ragged last spatial tile (L=576, TL=256 -> last block has 64 valid lanes).
    H3 = W3 = 24
    x3 = jax.random.normal(k5, (B, C, H3, W3), jnp.float32)
    y3 = layernorm2d(x3, gamma, beta, max_lanes=256)
    jax.block_until_ready(y3)
    y3_ref = layernorm2d_ref(x3, gamma, beta)
    assert bool(jnp.allclose(y3, y3_ref, rtol=1e-5, atol=1e-5)), \
        float(jnp.max(jnp.abs(y3 - y3_ref)))

    print("KERNEL_OK")
</pallas_src>

<mosaic_0001>
module attributes {stable_mosaic.version = 11 : i64} {
  func.func @_layernorm2d_kernel(%arg0: i32, %arg1: i32, %arg2: memref<1x16x256xf32, #tpu.memory_space<vmem>>, %arg3: memref<16x128xf32, #tpu.memory_space<vmem>>, %arg4: memref<16x128xf32, #tpu.memory_space<vmem>>, %arg5: memref<1x16x256xf32, #tpu.memory_space<vmem>>) attributes {dimension_semantics = [#tpu.dimension_semantics<parallel>, #tpu.dimension_semantics<parallel>], iteration_bounds = array<i64: 2, 1>, scalar_prefetch = 0 : i64, scratch_operands = 0 : i64, tpu.core_type = #tpu.core_type<tc>, window_params = [{transform_indices = @transform_0, window_bounds = array<i64: 1, 16, 256>}, {pipeline_mode = #tpu.pipeline_mode<synchronous>, transform_indices = @transform_1, window_bounds = array<i64: 16, 128>}, {pipeline_mode = #tpu.pipeline_mode<synchronous>, transform_indices = @transform_2, window_bounds = array<i64: 16, 128>}, {transform_indices = @transform_3, window_bounds = array<i64: 1, 16, 256>}]} {
    %c0 = arith.constant 0 : index
    %c0_0 = arith.constant 0 : index
    %c0_1 = arith.constant 0 : index
    %0 = vector.load %arg2[%c0, %c0_0, %c0_1] : memref<1x16x256xf32, #tpu.memory_space<vmem>>, vector<1x16x256xf32>
    %1 = vector.shape_cast %0 : vector<1x16x256xf32> to vector<16x256xf32>
    %cst = arith.constant dense<0.000000e+00> : vector<256xf32>
    %2 = vector.multi_reduction <add>, %1, %cst [0] : vector<16x256xf32> to vector<256xf32>
    %3 = vector.shape_cast %2 : vector<256xf32> to vector<1x256xf32>
    %4 = arith.mulf %1, %1 : vector<16x256xf32>
    %cst_2 = arith.constant dense<0.000000e+00> : vector<256xf32>
    %5 = vector.multi_reduction <add>, %4, %cst_2 [0] : vector<16x256xf32> to vector<256xf32>
    %6 = vector.shape_cast %5 : vector<256xf32> to vector<1x256xf32>
    %cst_3 = arith.constant 6.250000e-02 : f32
    %7 = vector.broadcast %cst_3 : f32 to vector<1x256xf32>
    %8 = arith.mulf %3, %7 : vector<1x256xf32>
    %cst_4 = arith.constant 6.250000e-02 : f32
    %9 = vector.broadcast %cst_4 : f32 to vector<1x256xf32>
    %10 = arith.mulf %6, %9 : vector<1x256xf32>
    %11 = arith.mulf %8, %8 : vector<1x256xf32>
    %12 = arith.subf %10, %11 : vector<1x256xf32>
    %cst_5 = arith.constant 0.000000e+00 : f32
    %13 = vector.broadcast %cst_5 : f32 to vector<1x256xf32>
    %14 = arith.maximumf %12, %13 : vector<1x256xf32>
    %cst_6 = arith.constant 9.99999974E-6 : f32
    %15 = vector.broadcast %cst_6 : f32 to vector<1x256xf32>
    %16 = arith.addf %14, %15 : vector<1x256xf32>
    %17 = math.rsqrt %16 : vector<1x256xf32>
    %c0_7 = arith.constant 0 : index
    %c0_8 = arith.constant 0 : index
    %18 = vector.load %arg3[%c0_7, %c0_8] : memref<16x128xf32, #tpu.memory_space<vmem>>, vector<16x128xf32>
    %19 = vector.extract_strided_slice %18 {offsets = [0, 0], sizes = [16, 1], strides = [1, 1]} : vector<16x128xf32> to vector<16x1xf32>
    %c0_9 = arith.constant 0 : index
    %c0_10 = arith.constant 0 : index
    %20 = vector.load %arg4[%c0_9, %c0_10] : memref<16x128xf32, #tpu.memory_space<vmem>>, vector<16x128xf32>
    %21 = vector.extract_strided_slice %20 {offsets = [0, 0], sizes = [16, 1], strides = [1, 1]} : vector<16x128xf32> to vector<16x1xf32>
    %22 = vector.broadcast %8 : vector<1x256xf32> to vector<16x256xf32>
    %23 = arith.subf %1, %22 : vector<16x256xf32>
    %24 = vector.broadcast %17 : vector<1x256xf32> to vector<16x256xf32>
    %25 = arith.mulf %23, %24 : vector<16x256xf32>
    %26 = vector.broadcast %19 : vector<16x1xf32> to vector<16x256xf32>
    %27 = arith.mulf %25, %26 : vector<16x256xf32>
    %28 = vector.broadcast %21 : vector<16x1xf32> to vector<16x256xf32>
    %29 = arith.addf %27, %28 : vector<16x256xf32>
    %c0_11 = arith.constant 0 : index
    %c0_12 = arith.constant 0 : index
    %c0_13 = arith.constant 0 : index
    %30 = vector.load %arg5[%c0_11, %c0_12, %c0_13] : memref<1x16x256xf32, #tpu.memory_space<vmem>>, vector<1x16x256xf32>
    %31 = vector.shape_cast %30 : vector<1x16x256xf32> to vector<16x256xf32>
    %32 = vector.shape_cast %29 : vector<16x256xf32> to vector<1x16x256xf32>
    tpu.vector_store %arg5[%c0_11, %c0_12, %c0_13], %32 {strides = array<i32>} : memref<1x16x256xf32, #tpu.memory_space<vmem>>, vector<1x16x256xf32>,
    return
  }
  func.func @transform_0(%arg0: i32, %arg1: i32) -> (i32, i32, i32) {
    %c0_i32 = arith.constant 0 : i32
    %c0_i32_0 = arith.constant 0 : i32
    return %arg0, %c0_i32, %arg1 : i32, i32, i32
  }
  func.func @transform_1(%arg0: i32, %arg1: i32) -> (i32, i32) {
    %c0_i32 = arith.constant 0 : i32
    %c0_i32_0 = arith.constant 0 : i32
    %c0_i32_1 = arith.constant 0 : i32
    return %c0_i32, %c0_i32_0 : i32, i32
  }
  func.func @transform_2(%arg0: i32, %arg1: i32) -> (i32, i32) {
    %c0_i32 = arith.constant 0 : i32
    %c0_i32_0 = arith.constant 0 : i32
    %c0_i32_1 = arith.constant 0 : i32
    return %c0_i32, %c0_i32_0 : i32, i32
  }
  func.func @transform_3(%arg0: i32, %arg1: i32) -> (i32, i32, i32) {
    %c0_i32 = arith.constant 0 : i32
    %c0_i32_0 = arith.constant 0 : i32
    return %arg0, %c0_i32, %arg1 : i32, i32, i32
  }
}

</mosaic_0001>

<llo_original>
// kernel: tpu_custom_call.1
$region0: #{tpu_custom_call.1}
  #allocation0 [shape = 'u32[]', space=smem, size = 0x4, offset = 0x4, fixed_abs, tag = 'smem constant byte address 0x4 - core index']
  #allocation1 [shape = 'u32[72,128]{1,0:T(1,128)}', space=vmem, size = 0x9000, scoped, tag = 'internal scratch']
  %s0 = inlined_call_operand.hbm [shape: f32[2,16,256], index: 0, kind: input, shape index: {}]
  %s1 = inlined_call_operand.hbm [shape: f32[16,128], index: 1, kind: input, shape index: {}]
  %s2 = inlined_call_operand.hbm [shape: f32[16,128], index: 2, kind: input, shape index: {}]
  %s3 = inlined_call_operand.hbm [shape: f32[2,16,256], index: 3, kind: output, shape index: {}]
  %s4 = sld [smem:[#allocation0]]
  $region57: #{tpu_custom_call.1} parent=0
    _
  %s6 = ssub.s32 1, %s4
  %s7 = scalar_select 0, %s6, %s4
  $region1: #{tpu_custom_call.1} parent=0
    #allocation2 [shape = 'u8[32768]{0}', space=vmem, size = 0x8000, scoped, tag = 'input window, operand 0']
    #allocation3 [shape = 's32[2]{0}', space=sflag, size = 0x8, scoped, tag = 'scoped memory for tpu_custom_call.1']
    #allocation4 [shape = 's32[2]{0}', space=sflag, size = 0x8, scoped, tag = 'scoped memory for tpu_custom_call.1']
    #allocation5 [shape = 'u8[8192]{0}', space=vmem, size = 0x2000, scoped, tag = 'input window, operand 1, single buffered']
    #allocation6 [shape = 's32[1]{0}', space=sflag, size = 0x4, scoped, tag = 'scoped memory for tpu_custom_call.1']
    #allocation7 [shape = 'u8[8192]{0}', space=vmem, size = 0x2000, scoped, tag = 'input window, operand 2, single buffered']
    #allocation8 [shape = 'u8[32768]{0}', space=vmem, size = 0x8000, scoped, tag = 'output window, operand 0']
    %8 = vsyncpa [#allocation3], 0
    %s9 = scalar_lea.sflag [#allocation3], 1
    %10 = vsyncpa %s9, 0
    %11 = vsyncpa [#allocation6], 0
    %12 = vsyncpa [#allocation4], 0
    %s13 = scalar_lea.sflag [#allocation4], 1
    %14 = vsyncpa %s13, 0
    loop: start=0, step=1, limit=4
    $region2: #{tpu_custom_call.1} parent=1 // loop_pre_header
      _
    $region3: #{tpu_custom_call.1} parent=1 // loop_header
      %s16 = sphi 0, %s20
      %p17 = scmp.ge.s32.totalorder %s16, 4
      %s23 = sphi 0, %s35
      %s24 = sphi 0, %s31
      %s25 = sphi 0, %s23
      %s26 = sphi 0, %s24
      %s27 = sphi 0, %s25
      %s28 = sphi 0, %s26
      %s40 = sphi 0, %s42
      %s43 = sphi 0, %s40
      %s44 = sphi 0, %s43
      %s60 = sphi 0, %s44
      %s64 = sphi 0, %s64
      %s66 = sphi 0, %s64
      %s67 = sphi 0, %s66
      %s81 = sphi 0, %s67
      %s85 = sphi 0, %s85
      %s87 = sphi 0, %s85
      %s88 = sphi 0, %s87
      %s102 = sphi 0, %s88
      %s110 = sphi 0, %s112
      %s113 = sphi 0, %s110
      %s114 = sphi 0, %s113
      %s130 = sphi 0, %s114
    $region4: #{tpu_custom_call.1} parent=1 // loop_header_branch
      %19 = sbr.rel (%p17) target = $region8
    $region5: #{tpu_custom_call.1} parent=1 // loop_body
      %s21 = ssub.s32 %s16, 1
      %s22 = ssub.s32 %s16, 2
      %s29 = sadd.s32 1, %s24
      %p30 = scmp.ge.s32.totalorder %s29, 1
      %s31 = scalar_select %p30, 0, %s29
      %s32 = sadd.s32 1, %s23
      %s33 = scalar_select %p30, %s32, %s23
      %p34 = scmp.ge.s32.totalorder %s33, 2
      %s35 = scalar_select %p34, 0, %s33
      %s36 = ssub.s32 %s23, %s35
      %s37 = ssub.s32 %s24, %s31
      %s38 = sor.u32 %s36, %s37
      %p39 = scmp.eq.s32.totalorder %s38, 0
      %s41 = sadd.s32 %s40, 1
      %s42 = scalar_select %p39, %s40, %s41
      %p45 = pneg %p39
      %p46 = scmp.eq.s32.totalorder %s16, 1
      %p47 = por %p45, %p46
      %p48 = scmp.ne.s32.totalorder %s40, %s43
      %p49 = scmp.eq.s32.totalorder %s16, 0
      %p50 = por %p48, %p49
      %p51 = scmp.ne.s32.totalorder %s40, %s43
      %p52 = scmp.eq.s32.totalorder %s21, 1
      %p53 = por %p51, %p52
      %p54 = scmp.ne.s32.totalorder %s43, %s44
      %p55 = scmp.eq.s32.totalorder %s21, 0
      %p56 = por %p54, %p55
      %p57 = scmp.ne.s32.totalorder %s43, %s44
      %p58 = scmp.eq.s32.totalorder %s22, 1
      %p59 = por %p57, %p58
      %p61 = scmp.ne.s32.totalorder %s44, %s60
      %p62 = scmp.eq.s32.totalorder %s22, 0
      %p63 = por %p61, %p62
      %s65 = sadd.s32 %s64, 1
      %p68 = scmp.eq.s32.totalorder %s16, 1
      %p69 = scmp.ne.s32.totalorder %s64, %s66
      %p70 = scmp.eq.s32.totalorder %s16, 0
      %p71 = por %p69, %p70
      %p72 = scmp.ne.s32.totalorder %s64, %s66
      %p73 = scmp.eq.s32.totalorder %s21, 1
      %p74 = por %p72, %p73
      %p75 = scmp.ne.s32.totalorder %s66, %s67
      %p76 = scmp.eq.s32.totalorder %s21, 0
      %p77 = por %p75, %p76
      %p78 = scmp.ne.s32.totalorder %s66, %s67
      %p79 = scmp.eq.s32.totalorder %s22, 1
      %p80 = por %p78, %p79
      %p82 = scmp.ne.s32.totalorder %s67, %s81
      %p83 = scmp.eq.s32.totalorder %s22, 0
      %p84 = por %p82, %p83
      %s86 = sadd.s32 %s85, 1
      %p89 = scmp.eq.s32.totalorder %s16, 1
      %p90 = scmp.ne.s32.totalorder %s85, %s87
      %p91 = scmp.eq.s32.totalorder %s16, 0
      %p92 = por %p90, %p91
      %p93 = scmp.ne.s32.totalorder %s85, %s87
      %p94 = scmp.eq.s32.totalorder %s21, 1
      %p95 = por %p93, %p94
      %p96 = scmp.ne.s32.totalorder %s87, %s88
      %p97 = scmp.eq.s32.totalorder %s21, 0
      %p98 = por %p96, %p97
      %p99 = scmp.ne.s32.totalorder %s87, %s88
      %p100 = scmp.eq.s32.totalorder %s22, 1
      %p101 = por %p99, %p100
      %p103 = scmp.ne.s32.totalorder %s88, %s102
      %p104 = scmp.eq.s32.totalorder %s22, 0
      %p105 = por %p103, %p104
      %s106 = ssub.s32 %s23, %s35
      %s107 = ssub.s32 %s24, %s31
      %s108 = sor.u32 %s106, %s107
      %p109 = scmp.eq.s32.totalorder %s108, 0
      %s111 = sadd.s32 %s110, 1
      %s112 = scalar_select %p109, %s110, %s111
      %p115 = pneg %p109
      %p116 = scmp.eq.s32.totalorder %s16, 1
      %p117 = por %p115, %p116
      %p118 = scmp.ne.s32.totalorder %s110, %s113
      %p119 = scmp.eq.s32.totalorder %s16, 0
      %p120 = por %p118, %p119
      %p121 = scmp.ne.s32.totalorder %s110, %s113
      %p122 = scmp.eq.s32.totalorder %s21, 1
      %p123 = por %p121, %p122
      %p124 = scmp.ne.s32.totalorder %s113, %s114
      %p125 = scmp.eq.s32.totalorder %s21, 0
      %p126 = por %p124, %p125
      %p127 = scmp.ne.s32.totalorder %s113, %s114
      %p128 = scmp.eq.s32.totalorder %s22, 1
      %p129 = por %p127, %p128
      %p131 = scmp.ne.s32.totalorder %s114, %s130
      %p132 = scmp.eq.s32.totalorder %s22, 0
      %p133 = por %p131, %p132
      %p134 = scmp.le.s32.totalorder 1, %s16
      %p135 = scmp.lt.s32.totalorder %s16, 3
      %p136 = pnand %p134, %p135
      %p137 = pneg %p136
      // Predicated region
      $region9: #{tpu_custom_call.1} parent=5 // pred_check
        _
      $region10: #{tpu_custom_call.1} parent=5 // pred_check_branch
        %139 = sbr.rel (%p136) target = $region12
      $region11: #{tpu_custom_call.1} parent=5 // pred_region
        %s140 = ssub.s32 %s16, 1
        // Predicated region
        $region13: #{tpu_custom_call.1} parent=11 // pred_check
          %p141 = pneg %p77
        $region14: #{tpu_custom_call.1} parent=11 // pred_check_branch
          %143 = sbr.rel (%p141) target = $region16
        $region15: #{tpu_custom_call.1} parent=11 // pred_region
          %145 = vsyncadd [#allocation6], 0
          %s146 = sshll.u32 %s1, 4
          %s147 = int_to_ptr.hbm [resolvable:$true] %s146
          %s148 = sshll.u32 [#allocation5], 4
          %s149 = int_to_ptr.vmem [resolvable:$true] %s148
          %154 = dma.hbm_to_vmem [thread:$0]  %s147, 256, %s149, [#allocation6], 128, 128, 8
        $region16: #{tpu_custom_call.1} parent=11 // pred_fallthru
          _
        // Predicated region
        $region17: #{tpu_custom_call.1} parent=11 // pred_check
          %p155 = pneg %p98
        $region18: #{tpu_custom_call.1} parent=11 // pred_check_branch
          %157 = sbr.rel (%p155) target = $region20
        $region19: #{tpu_custom_call.1} parent=11 // pred_region
          %159 = vsyncadd [#allocation6], 0
          %s160 = sshll.u32 %s2, 4
          %s161 = int_to_ptr.hbm [resolvable:$true] %s160
          %s162 = sshll.u32 [#allocation7], 4
          %s163 = int_to_ptr.vmem [resolvable:$true] %s162
          %168 = dma.hbm_to_vmem [thread:$0]  %s161, 256, %s163, [#allocation6], 128, 128, 8
        $region20: #{tpu_custom_call.1} parent=11 // pred_fallthru
          _
      $region12: #{tpu_custom_call.1} parent=5 // pred_fallthru
        _
      %p169 = scmp.lt.s32.totalorder %s16, 2
      // Predicated region
      $region21: #{tpu_custom_call.1} parent=5 // pred_check
        %p170 = pneg %p169
      $region22: #{tpu_custom_call.1} parent=5 // pred_check_branch
        %172 = sbr.rel (%p170) target = $region24
      $region23: #{tpu_custom_call.1} parent=5 // pred_region
        // Predicated region
        $region25: #{tpu_custom_call.1} parent=23 // pred_check
          %p173 = pneg %p50
        $region26: #{tpu_custom_call.1} parent=23 // pred_check_branch
          %175 = sbr.rel (%p173) target = $region28
        $region27: #{tpu_custom_call.1} parent=23 // pred_region
          %s176 = sand.u32 %s40, 1
          %s177 = scalar_lea.sflag [#allocation3], %s176
          %s178 = sand.u32 %s40, 1
          %s179 = smul.addr %s178, 32
          %s180 = scalar_lea.vmem [#allocation2], %s179
          %s181 = smul.u32 2, %s24
          %183 = vsyncadd %s177, 0
          %s184 = smul.addr %s23, 4
          %s185 = sadd.s32 %s181, %s184
          %s186 = smul.addr %s185, 8
          %s187 = scalar_lea.hbm %s0, %s186
          %s188 = sshll.u32 %s187, 4
          %s189 = int_to_ptr.hbm [resolvable:$true] %s188
          %s190 = sshll.u32 %s180, 4
          %s191 = int_to_ptr.vmem [resolvable:$true] %s190
          %196 = dma.hbm_to_vmem [thread:$0]  %s189, 512, %s191, %s177, 256, 256, 16
        $region28: #{tpu_custom_call.1} parent=23 // pred_fallthru
          _
      $region24: #{tpu_custom_call.1} parent=5 // pred_fallthru
        _
      %p197 = scmp.le.s32.totalorder 1, %s16
      %p198 = scmp.lt.s32.totalorder %s16, 3
      %p199 = pnand %p197, %p198
      %p200 = pneg %p199
      // Predicated region
      $region29: #{tpu_custom_call.1} parent=5 // pred_check
        _
      $region30: #{tpu_custom_call.1} parent=5 // pred_check_branch
        %202 = sbr.rel (%p199) target = $region32
      $region31: #{tpu_custom_call.1} parent=5 // pred_region
        %s203 = ssub.s32 %s16, 1
        %s204 = sand.u32 %s43, 1
        %s205 = scalar_lea.sflag [#allocation3], %s204
        %s206 = sand.u32 %s43, 1
        %s207 = smul.addr %s206, 32
        %s208 = scalar_lea.vmem [#allocation2], %s207
        // Predicated region
        $region33: #{tpu_custom_call.1} parent=31 // pred_check
          %p209 = pneg %p56
        $region34: #{tpu_custom_call.1} parent=31 // pred_check_branch
          %211 = sbr.rel (%p209) target = $region36
        $region35: #{tpu_custom_call.1} parent=31 // pred_region
          %213 = dma.done %s205, 512
        $region36: #{tpu_custom_call.1} parent=31 // pred_fallthru
          _
        // Predicated region
        $region37: #{tpu_custom_call.1} parent=31 // pred_check
          %p214 = pneg %p77
        $region38: #{tpu_custom_call.1} parent=31 // pred_check_branch
          %216 = sbr.rel (%p214) target = $region40
        $region39: #{tpu_custom_call.1} parent=31 // pred_region
          %218 = dma.done [#allocation6], 256
        $region40: #{tpu_custom_call.1} parent=31 // pred_fallthru
          _
        // Predicated region
        $region41: #{tpu_custom_call.1} parent=31 // pred_check
          %p219 = pneg %p98
        $region42: #{tpu_custom_call.1} parent=31 // pred_check_branch
          %221 = sbr.rel (%p219) target = $region44
        $region43: #{tpu_custom_call.1} parent=31 // pred_region
          %223 = dma.done [#allocation6], 256
        $region44: #{tpu_custom_call.1} parent=31 // pred_fallthru
          _
        %s224 = sand.u32 %s43, 1
        %s225 = scalar_lea.sflag [#allocation3], %s224
        %s226 = sand.u32 %s43, 1
        %s227 = smul.addr %s226, 32
        %s228 = scalar_lea.vmem [#allocation2], %s227
        %p229 = pneg %p56
        %p230 = pneg %p53
        %p231 = pneg %p77
        %p232 = pneg %p74
        %p233 = pneg %p98
        %p234 = pneg %p95
        %p235 = pneg %p126
        %p236 = pneg %p123
        %s237 = sand.u32 %s113, 1
        %s238 = scalar_lea.sflag [#allocation4], %s237
        %s239 = sand.u32 %s113, 1
        %s240 = smul.addr %s239, 32
        %s241 = scalar_lea.vmem [#allocation8], %s240
        %s242 = smul.u32 2, %s26
        %s243 = smul.u32 2, %s26
        %v244 = vld [vmem:[%s208] sm:$0xff]
        %v245 = vld [vmem:[%s208 + $0x8] sm:$0xff]
        %v246 = vld [vmem:[%s208 + $0x10] sm:$0xff]
        %v247 = vld [vmem:[%s208 + $0x18] sm:$0xff]
        %v248 = vadd.f32 %v244, %v246
        %v249 = vrot.slane %v248, 4
        %v250 = vadd.f32 %v248, %v249
        %v251 = vrot.slane %v250, 2
        %v252 = vadd.f32 %v250, %v251
        %v253 = vrot.slane %v252, 1
        %v254 = vadd.f32 %v252, %v253
        %v255 = vadd.f32 %v245, %v247
        %v256 = vrot.slane %v255, 4
        %v257 = vadd.f32 %v255, %v256
        %v258 = vrot.slane %v257, 2
        %v259 = vadd.f32 %v257, %v258
        %v260 = vrot.slane %v259, 1
        %v261 = vadd.f32 %v259, %v260
        %v262 = vmul.f32 %v244, %v244
        %v263 = vmul.f32 %v245, %v245
        %v264 = vmul.f32 %v246, %v246
        %v265 = vmul.f32 %v247, %v247
        %v266 = vadd.f32 %v262, %v264
        %v267 = vrot.slane %v266, 4
        %v268 = vadd.f32 %v266, %v267
        %v269 = vrot.slane %v268, 2
        %v270 = vadd.f32 %v268, %v269
        %v271 = vrot.slane %v270, 1
        %v272 = vadd.f32 %v270, %v271
        %v273 = vadd.f32 %v263, %v265
        %v274 = vrot.slane %v273, 4
        %v275 = vadd.f32 %v273, %v274
        %v276 = vrot.slane %v275, 2
        %v277 = vadd.f32 %v275, %v276
        %v278 = vrot.slane %v277, 1
        %v279 = vadd.f32 %v277, %v278
        %v280 = vmul.f32 %v254, 0.0625
        %v281 = vmul.f32 %v261, 0.0625
        %v282 = vmul.f32 %v272, 0.0625
        %v283 = vmul.f32 %v279, 0.0625
        %v284 = vmul.f32 %v280, %v280
        %v285 = vmul.f32 %v281, %v281
        %v286 = vsub.f32 %v282, %v284
        %v287 = vsub.f32 %v283, %v285
        %v288 = vmax.f32 %v286, 0.0
        %v289 = vmax.f32 %v287, 0.0
        %v290 = vadd.f32 %v288, 1e-05
        %v291 = vadd.f32 %v289, 1e-05
        %v292 = vrsqrt.pop %v290
        %v293 = vmul.f32 %v292, %v290
        %v294 = vmul.f32 %v293, %v292
        %v295 = vmul.f32 0.5, %v294
        %v296 = vsub.f32 1.5, %v295
        %v297 = vmul.f32 %v292, %v296
        %vm298 = vweird.f32 %v290
        %vm299 = vweird.f32 %v292
        %vm300 = vmor %vm298, %vm299
        %v301 = vsel %vm300, %v292, %v297
        %v302 = vrsqrt.pop %v291
        %v303 = vmul.f32 %v302, %v291
        %v304 = vmul.f32 %v303, %v302
        %v305 = vmul.f32 0.5, %v304
        %v306 = vsub.f32 1.5, %v305
        %v307 = vmul.f32 %v302, %v306
        %vm308 = vweird.f32 %v291
        %vm309 = vweird.f32 %v302
        %vm310 = vmor %vm308, %vm309
        %v311 = vsel %vm310, %v302, %v307
        %v312 = vld [vmem:[#allocation5] sm:$0xff]
        %v313 = vld [vmem:[#allocation5 + $0x8] sm:$0xff]
        %v314 = vld [vmem:[#allocation7] sm:$0xff]
        %v315 = vld [vmem:[#allocation7 + $0x8] sm:$0xff]
        %v316 = vsub.f32 %v244, %v280
        %v317 = vsub.f32 %v245, %v281
        %v318 = vsub.f32 %v246, %v280
        %v319 = vsub.f32 %v247, %v281
        %v320 = vmul.f32 %v316, %v301
        %v321 = vmul.f32 %v317, %v311
        %v322 = vmul.f32 %v318, %v301
        %v323 = vmul.f32 %v319, %v311
        %325 = vset.pattern.permute.xlu0 0
        %326 = vperm.xlu0 %325, %v312
        %v327 = vpop.permute.xlu0 %326
        %330 = vset.pattern.permute.xlu0 0
        %331 = vperm.xlu0 %330, %v313
        %v332 = vpop.permute.xlu0 %331
        %v334 = vmul.f32 %v320, %v327
        %v335 = vmul.f32 %v321, %v327
        %v336 = vmul.f32 %v322, %v332
        %v337 = vmul.f32 %v323, %v332
        %339 = vset.pattern.permute.xlu0 0
        %340 = vperm.xlu0 %339, %v314
        %v341 = vpop.permute.xlu0 %340
        %344 = vset.pattern.permute.xlu0 0
        %345 = vperm.xlu0 %344, %v315
        %v346 = vpop.permute.xlu0 %345
        %v348 = vadd.f32 %v334, %v341
        %v349 = vadd.f32 %v335, %v341
        %v350 = vadd.f32 %v336, %v346
        %v351 = vadd.f32 %v337, %v346
        %352 = vst [vmem:[%s241] sm:$0xff] %v348
        %353 = vst [vmem:[%s241 + $0x8] sm:$0xff] %v349
        %354 = vst [vmem:[%s241 + $0x10] sm:$0xff] %v350
        %355 = vst [vmem:[%s241 + $0x18] sm:$0xff] %v351
        %s356 = sand.u32 %s113, 1
        %s357 = scalar_lea.sflag [#allocation4], %s356
        %s358 = sand.u32 %s113, 1
        %s359 = smul.addr %s358, 32
        %s360 = scalar_lea.vmem [#allocation8], %s359
        // Predicated region
        $region45: #{tpu_custom_call.1} parent=31 // pred_check
          %p361 = pneg %p123
        $region46: #{tpu_custom_call.1} parent=31 // pred_check_branch
          %363 = sbr.rel (%p361) target = $region48
        $region47: #{tpu_custom_call.1} parent=31 // pred_region
          %s364 = smul.u32 2, %s26
          %366 = vsyncadd %s357, 0
          %s367 = smul.addr %s25, 4
          %s368 = sadd.s32 %s364, %s367
          %s369 = smul.addr %s368, 8
          %s370 = scalar_lea.hbm %s3, %s369
          %s371 = sshll.u32 %s360, 4
          %s372 = int_to_ptr.vmem [resolvable:$true] %s371
          %s373 = sshll.u32 %s370, 4
          %s374 = int_to_ptr.hbm [resolvable:$true] %s373
          %379 = dma.vmem_to_hbm [thread:$0]  %s372, 512, %s374, %s357, 256, 256, 16
        $region48: #{tpu_custom_call.1} parent=31 // pred_fallthru
          _
      $region32: #{tpu_custom_call.1} parent=5 // pred_fallthru
        _
      %p380 = scmp.le.s32.totalorder 2, %s16
      // Predicated region
      $region49: #{tpu_custom_call.1} parent=5 // pred_check
        %p381 = pneg %p380
      $region50: #{tpu_custom_call.1} parent=5 // pred_check_branch
        %383 = sbr.rel (%p381) target = $region52
      $region51: #{tpu_custom_call.1} parent=5 // pred_region
        %s384 = ssub.s32 %s16, 2
        // Predicated region
        $region53: #{tpu_custom_call.1} parent=51 // pred_check
          %p385 = pneg %p129
        $region54: #{tpu_custom_call.1} parent=51 // pred_check_branch
          %387 = sbr.rel (%p385) target = $region56
        $region55: #{tpu_custom_call.1} parent=51 // pred_region
          %s388 = sand.u32 %s114, 1
          %s389 = scalar_lea.sflag [#allocation4], %s388
          %s390 = sand.u32 %s114, 1
          %s391 = smul.addr %s390, 32
          %s392 = scalar_lea.vmem [#allocation8], %s391
          %394 = dma.done %s389, 512
        $region56: #{tpu_custom_call.1} parent=51 // pred_fallthru
          _
      $region52: #{tpu_custom_call.1} parent=5 // pred_fallthru
        _
    $region6: #{tpu_custom_call.1} parent=1 // loop_footer
      %s20 = sadd.s32 1, %s16
    $region7: #{tpu_custom_call.1} parent=1 // loop_footer_branch
      %15 = sbr.rel target = $region3
    $region8: #{tpu_custom_call.1} parent=1 // loop_exit
      _
    %395 = vsyncpa [#allocation3], 1
    %s396 = scalar_lea.sflag [#allocation3], 1
    %397 = vsyncpa %s396, 1
    %398 = vsyncpa [#allocation6], 1
    %399 = vsyncpa [#allocation4], 1
    %s400 = scalar_lea.sflag [#allocation4], 1
    %401 = vsyncpa %s400, 1

</llo_original>
